<compile_context>
chip_gen: v6e
topology: v6e:2x2x1
jax: 0.10.0
libtpu: 0.0.40
codegen_flags: <defaults>
</compile_context>

<pallas_src>
import jax
import jax.numpy as jnp
import numpy as np
from jax.experimental import pallas as pl
from jax.experimental.pallas import tpu as pltpu

# 56 MiB: above the 32 MiB scoped default on all generations, below v7x's
# 64 MiB physical VMEM.
_VMEM_LIMIT = 56 * 1024 * 1024
# Tile-selection budget (leaves headroom under _VMEM_LIMIT for double-buffers
# + compiler internal scratch).
_VMEM_BUDGET = 40 * 1024 * 1024


# ----------------------------------------------------------------------------
# helpers
# ----------------------------------------------------------------------------
def _pick_tile(dim, candidates):
    """Largest candidate tile that evenly divides `dim`; else the full dim."""
    for c in candidates:
        if dim >= c and dim % c == 0:
            return c
    return dim


def _dot_precision(dtype):
    # f32 operands: exact MXU path (validation path). bf16 operands: default.
    return (jax.lax.Precision.HIGHEST if dtype == jnp.float32
            else jax.lax.Precision.DEFAULT)


# ----------------------------------------------------------------------------
# Tiled linear:  y = x @ w_t + b     (w_t already transposed to (K, N))
# ----------------------------------------------------------------------------
def _make_linear_kernel_noacc(precision):
    def kernel(x_ref, w_ref, b_ref, o_ref):
        o_ref[...] = (jnp.dot(x_ref[...], w_ref[...],
                              preferred_element_type=jnp.float32,
                              precision=precision)
                      + b_ref[...]).astype(o_ref.dtype)
    return kernel


def _make_linear_kernel_acc(precision):
    def kernel(x_ref, w_ref, b_ref, o_ref, acc_ref):
        @pl.when(pl.program_id(2) == 0)
        def _():
            acc_ref[...] = jnp.zeros_like(acc_ref)

        acc_ref[...] += jnp.dot(x_ref[...], w_ref[...],
                                preferred_element_type=jnp.float32,
                                precision=precision)

        @pl.when(pl.program_id(2) == pl.num_programs(2) - 1)
        def _():
            o_ref[...] = (acc_ref[...] + b_ref[...]).astype(o_ref.dtype)
    return kernel


def pallas_linear(x, w_t, b, *, out_dtype=None):
    """x: (M, K), w_t: (K, N) pre-transposed, b: (N,) f32 -> (M, N)."""
    M, K = x.shape
    K2, N = w_t.shape
    assert K == K2
    out_dtype = out_dtype if out_dtype is not None else x.dtype
    precision = _dot_precision(x.dtype)

    tm = _pick_tile(M, (512, 256, 128))
    tn = _pick_tile(N, (512, 256, 128))
    b2 = b.reshape(1, N).astype(jnp.float32)

    if K <= 2048:
        # Whole reduction in one block: no acc scratch, no init/finalize
        # pl.when, 2-D all-parallel grid (shards across v7x's two TCs).
        grid = (M // tm, N // tn)
        return pl.pallas_call(
            _make_linear_kernel_noacc(precision),
            out_shape=jax.ShapeDtypeStruct((M, N), out_dtype),
            grid_spec=pltpu.PrefetchScalarGridSpec(
                num_scalar_prefetch=0,
                grid=grid,
                in_specs=[
                    pl.BlockSpec((tm, K), lambda i, j: (i, 0)),
                    pl.BlockSpec((K, tn), lambda i, j: (0, j)),
                    pl.BlockSpec((1, tn), lambda i, j: (0, j)),
                ],
                out_specs=pl.BlockSpec((tm, tn), lambda i, j: (i, j)),
            ),
            compiler_params=pltpu.CompilerParams(
                dimension_semantics=("parallel", "parallel"),
                vmem_limit_bytes=_VMEM_LIMIT),
        )(x, w_t, b2)

    # Large K: tile the reduction, f32 VMEM accumulator, reduction axis last.
    tk = _pick_tile(K, (512, 256, 128))
    grid = (M // tm, N // tn, K // tk)
    return pl.pallas_call(
        _make_linear_kernel_acc(precision),
        out_shape=jax.ShapeDtypeStruct((M, N), out_dtype),
        grid_spec=pltpu.PrefetchScalarGridSpec(
            num_scalar_prefetch=0,
            grid=grid,
            in_specs=[
                pl.BlockSpec((tm, tk), lambda i, j, k: (i, k)),
                pl.BlockSpec((tk, tn), lambda i, j, k: (k, j)),
                pl.BlockSpec((1, tn), lambda i, j, k: (0, j)),
            ],
            out_specs=pl.BlockSpec((tm, tn), lambda i, j, k: (i, j)),
            scratch_shapes=[pltpu.VMEM((tm, tn), jnp.float32)],
        ),
        compiler_params=pltpu.CompilerParams(
            dimension_semantics=("parallel", "parallel", "arbitrary"),
            vmem_limit_bytes=_VMEM_LIMIT),
    )(x, w_t, b2)


# ----------------------------------------------------------------------------
# Flash attention fused with out_proj.
#   qkv (B, T, 3, H, Dh) -> out (B, T, E)   with E = H*Dh (lane-dense output)
# ----------------------------------------------------------------------------
def _select_attn_tiles(T, S, H, Dh, E, in_itemsize,
                       out_itemsize=4, budget_bytes=_VMEM_BUDGET):
    """Pick (tq, tk) under a VMEM budget, preferring large tq (cuts K/V
    HBM re-streaming), then large tk. Budget sized for v7x's 64 MiB VMEM."""
    def cands(dim):
        cs = [c for c in (512, 256, 128, 64, 32, 16, 8)
              if c <= dim and dim % c == 0]
        return cs or [dim]

    def est(tq, tk):
        blocks = (tq * H * Dh * in_itemsize            # q block
                  + 2 * tk * H * Dh * in_itemsize      # k, v blocks
                  + tq * E * out_itemsize              # output slab
                  + E * E * in_itemsize + E * 4        # resident w_out, b_out
                  + tk * 4)                            # pad bias
        scratch = H * tq * Dh * 4 + 2 * H * tq * 4     # acc, m, l (f32)
        return 2 * blocks + scratch                    # double-buffered

    best = None
    for tq in cands(T):
        for tk in cands(S):
            if est(tq, tk) <= budget_bytes:
                return tq, tk
            if best is None or est(tq, tk) < est(*best):
                best = (tq, tk)
    return best


def _make_attn_kernel(with_bias, exp_dtype, precision):
    def kernel(*refs):
        if with_bias:
            (q_ref, k_ref, v_ref, wout_ref, bout_ref, bias_ref,
             o_ref, m_ref, l_ref, acc_ref) = refs
        else:
            (q_ref, k_ref, v_ref, wout_ref, bout_ref,
             o_ref, m_ref, l_ref, acc_ref) = refs
            bias_ref = None

        ki = pl.program_id(2)

        @pl.when(ki == 0)
        def _():
            m_ref[...] = jnp.full_like(m_ref, -jnp.inf)
            l_ref[...] = jnp.zeros_like(l_ref)
            acc_ref[...] = jnp.zeros_like(acc_ref)

        # Blocks arrive as (1, t, 1, H, Dh) straight from the (B, T, 3, H, Dh)
        # qkv tensor: head split is done by index_maps, not XLA transposes.
        # The (t,H,Dh)->(H,t,Dh) swap below stays in VMEM (no HBM traffic).
        q = jnp.swapaxes(q_ref[...][0, :, 0], 0, 1)     # (H, tq, Dh)
        k = jnp.swapaxes(k_ref[...][0, :, 0], 0, 1)     # (H, tk, Dh)
        v = jnp.swapaxes(v_ref[...][0, :, 0], 0, 1)     # (H, tk, Dh)

        # Head-batched scores; k-transpose folded into the contraction dims.
        # q already carries the 1/sqrt(d) scale (folded into in_proj).
        s = jnp.einsum('hqd,hkd->hqk', q, k,
                       preferred_element_type=jnp.float32,
                       precision=precision)
        if with_bias:
            s = s + bias_ref[...]                       # (1,1,tk) broadcast

        m_prev = m_ref[...]                             # (H, tq, 1)
        m_new = jnp.maximum(m_prev, jnp.max(s, axis=-1, keepdims=True))
        alpha = jnp.exp(m_prev - m_new)
        # exp issued at the compute dtype (bf16 on v6e/v7x doubles EUP
        # throughput for the Dh<=64 EUP-bound regime); stats stay f32.
        p = jnp.exp((s - m_new).astype(exp_dtype))
        l_ref[...] = alpha * l_ref[...] + jnp.sum(
            p.astype(jnp.float32), axis=-1, keepdims=True)
        acc_ref[...] = alpha * acc_ref[...] + jnp.einsum(
            'hqk,hkd->hqd', p.astype(v.dtype), v,
            preferred_element_type=jnp.float32, precision=precision)
        m_ref[...] = m_new

        @pl.when(ki == pl.num_programs(2) - 1)
        def _():
            # Exact normalization (runs once per output tile -> ~free; the
            # approx reciprocal previously cost ~1e-3 relative error).
            o_n = (acc_ref[...] / l_ref[...]).astype(wout_ref.dtype)  # (H,tq,Dh)
            num_heads = acc_ref.shape[0]
            tq = acc_ref.shape[1]
            e_out = wout_ref.shape[2]
            # Fused out_proj: per-head (tq,Dh)@(Dh,E) accumulated in f32.
            # The head merge happens inside the contraction -> output is a
            # lane-dense (tq, E) slab, stored with unmasked vst.
            out = jnp.zeros((tq, e_out), jnp.float32)
            for h in range(num_heads):
                out = out + jnp.dot(o_n[h], wout_ref[h],
                                    preferred_element_type=jnp.float32,
                                    precision=precision)
            out = out + bout_ref[...]                   # (1, E) broadcast
            o_ref[...] = out[None].astype(o_ref.dtype)

    return kernel


def pallas_flash_attention_outproj(qkv, w_out_hde, b_out, pad_bias=None,
                                   out_dtype=jnp.float32):
    """qkv: (B, T, 3, H, Dh); w_out_hde: (H, Dh, E); b_out: (E,) f32;
    pad_bias: optional (B, S) additive f32 mask bias.  Returns (B, T, E)."""
    B, T, three, H, Dh = qkv.shape
    assert three == 3
    S = T
    E = w_out_hde.shape[-1]
    assert w_out_hde.shape == (H, Dh, E)

    tq, tk = _select_attn_tiles(T, S, H, Dh, E, qkv.dtype.itemsize)
    # NOTE(v7x): B * (T // tq) should be >= 2 for both TensorCores to get work.
    grid = (B, T // tq, S // tk)

    exp_dtype = jnp.bfloat16 if qkv.dtype == jnp.bfloat16 else jnp.float32
    precision = _dot_precision(qkv.dtype)
    with_bias = pad_bias is not None

    in_specs = [
        # q / k / v are three different windows of the SAME qkv tensor.
        pl.BlockSpec((1, tq, 1, H, Dh), lambda b, qi, ki: (b, qi, 0, 0, 0)),
        pl.BlockSpec((1, tk, 1, H, Dh), lambda b, qi, ki: (b, ki, 1, 0, 0)),
        pl.BlockSpec((1, tk, 1, H, Dh), lambda b, qi, ki: (b, ki, 2, 0, 0)),
        # out_proj weight / bias: constant index_map -> fetched once, resident.
        pl.BlockSpec((H, Dh, E), lambda b, qi, ki: (0, 0, 0)),
        pl.BlockSpec((1, E), lambda b, qi, ki: (0, 0)),
    ]
    operands = [qkv, qkv, qkv, w_out_hde,
                b_out.reshape(1, E).astype(jnp.float32)]
    if with_bias:
        in_specs.append(pl.BlockSpec((1, 1, tk), lambda b, qi, ki: (b, 0, ki)))
        operands.append(pad_bias.reshape(B, 1, S).astype(jnp.float32))

    return pl.pallas_call(
        _make_attn_kernel(with_bias, exp_dtype, precision),
        out_shape=jax.ShapeDtypeStruct((B, T, E), out_dtype),
        grid_spec=pltpu.PrefetchScalarGridSpec(
            num_scalar_prefetch=0,
            grid=grid,
            in_specs=in_specs,
            out_specs=pl.BlockSpec((1, tq, E), lambda b, qi, ki: (b, qi, 0)),
            scratch_shapes=[
                pltpu.VMEM((H, tq, 1), jnp.float32),    # running max
                pltpu.VMEM((H, tq, 1), jnp.float32),    # running sum
                pltpu.VMEM((H, tq, Dh), jnp.float32),   # PV accumulator
            ],
        ),
        compiler_params=pltpu.CompilerParams(
            dimension_semantics=("parallel", "parallel", "arbitrary"),
            vmem_limit_bytes=_VMEM_LIMIT),
    )(*operands)


# ----------------------------------------------------------------------------
# Module wrapper
# ----------------------------------------------------------------------------
class SelfMultiheadAttentionPallas:
    """Inference forward of SelfMultiheadAttention.

    Divergence from the PyTorch reference (documented, inference-only):
      * key_padding_mask is applied as a finite -1e30 additive bias instead of
        -inf, so a FULLY-masked row yields a uniform average of V rather than
        NaN. Partially-masked rows match the reference.
      * softmax dropout is a no-op (training=False).
    """

    def __init__(self, embed_dim, num_heads, bias=True, scaling_factor=1,
                 compute_dtype=jnp.bfloat16, key=None):
        self.embed_dim = embed_dim
        self.num_heads = num_heads
        self.head_dim = embed_dim // num_heads
        assert self.head_dim * num_heads == embed_dim
        self.scaling = float((self.head_dim * scaling_factor) ** (-0.5))
        self.compute_dtype = compute_dtype

        key = jax.random.PRNGKey(0) if key is None else key
        k1, k2, k3, k4 = jax.random.split(key, 4)
        # deterministic synthetic params (torch nn.Linear weight layout: (out, in))
        self.in_proj_w = (jax.random.normal(k1, (embed_dim * 3, embed_dim),
                                            jnp.float32)
                          * (1.0 / np.sqrt(embed_dim)))
        self.in_proj_b = jax.random.normal(k2, (embed_dim * 3,), jnp.float32) * 0.02
        self.out_proj_w = (jax.random.normal(k3, (embed_dim, embed_dim),
                                             jnp.float32)
                           * (1.0 / np.sqrt(embed_dim)))
        self.out_proj_b = jax.random.normal(k4, (embed_dim,), jnp.float32) * 0.02

        # Kernel-side params:
        #   * fold the 1/sqrt(d) q scaling into the q rows of in_proj (free),
        #   * pre-transpose in_proj once to (K, N) so the kernel never does .T,
        #   * pre-arrange out_proj as (H, Dh, E): head merge + out_proj are
        #     fused into the attention kernel (lane-dense output stores).
        scale_vec = jnp.concatenate([
            jnp.full((embed_dim,), self.scaling, jnp.float32),
            jnp.ones((2 * embed_dim,), jnp.float32),
        ])
        in_w_scaled = self.in_proj_w * scale_vec[:, None]          # (3E, E)
        self._in_proj_wT = in_w_scaled.T.astype(compute_dtype)     # (E, 3E)
        self._in_proj_b = self.in_proj_b * scale_vec                # f32
        self._out_proj_w_hde = (self.out_proj_w.T
                                .reshape(num_heads, self.head_dim, embed_dim)
                                .astype(compute_dtype))             # (H, Dh, E)

    def __call__(self, query, key_padding_mask=None):
        bsz, tgt_len, embed_dim = query.shape
        assert embed_dim == self.embed_dim
        H, Dh = self.num_heads, self.head_dim
        cd = self.compute_dtype

        # in_proj: (B*T, E) @ (E, 3E) + b  (tiled / pipelined Pallas matmul)
        x = query.reshape(bsz * tgt_len, embed_dim).astype(cd)
        qkv = pallas_linear(x, self._in_proj_wT, self._in_proj_b, out_dtype=cd)

        # FREE row-major reshape; head split handled by kernel index_maps.
        qkv5 = qkv.reshape(bsz, tgt_len, 3, H, Dh)

        pad_bias = None
        if key_padding_mask is not None:
            # finite large-negative avoids NaN from (-inf)-(-inf) in the
            # online-softmax running-max update.
            pad_bias = jnp.where(key_padding_mask.astype(bool),
                                 jnp.float32(-1e30), jnp.float32(0.0))

        # flash attention + fused out_proj -> (B, T, E) f32
        return pallas_flash_attention_outproj(
            qkv5, self._out_proj_w_hde, self.out_proj_b,
            pad_bias=pad_bias, out_dtype=jnp.float32)

    # pure-JAX reference (mirrors the PyTorch module) for validation
    def reference(self, query, key_padding_mask=None):
        hp = jax.lax.Precision.HIGHEST
        bsz, tgt_len, embed_dim = query.shape
        H, Dh = self.num_heads, self.head_dim
        qkv = (jnp.einsum('bte,fe->btf', query, self.in_proj_w, precision=hp)
               + self.in_proj_b)
        q, k, v = jnp.split(qkv, 3, axis=-1)

        def to_heads(t):
            return (t.reshape(bsz, tgt_len, H, Dh)
                    .transpose(0, 2, 1, 3)
                    .reshape(bsz * H, tgt_len, Dh))

        qh, kh, vh = to_heads(q) * self.scaling, to_heads(k), to_heads(v)
        s = jnp.einsum('btd,bsd->bts', qh, kh, precision=hp)
        if key_padding_mask is not None:
            m = key_padding_mask.astype(bool)[:, None, None, :]
            s = s.reshape(bsz, H, tgt_len, -1)
            s = jnp.where(m, -jnp.inf, s).reshape(bsz * H, tgt_len, -1)
        p = jax.nn.softmax(s, axis=-1)
        o = jnp.einsum('bts,bsd->btd', p, vh, precision=hp)
        o = (o.reshape(bsz, H, tgt_len, Dh).transpose(0, 2, 1, 3)
             .reshape(bsz, tgt_len, embed_dim))
        return (jnp.einsum('bte,fe->btf', o, self.out_proj_w, precision=hp)
                + self.out_proj_b)


# ----------------------------------------------------------------------------
if __name__ == "__main__":
    bsz, seq, embed_dim, num_heads = 2, 8, 32, 4

    root = jax.random.PRNGKey(0)
    k_in, k_params = jax.random.split(root)
    query = jax.random.normal(k_in, (bsz, seq, embed_dim), jnp.float32)
    # partial key-padding mask (no fully-masked rows; fully-masked rows
    # intentionally diverge from the -inf reference -- see class docstring)
    key_padding_mask = jnp.zeros((bsz, seq), jnp.bool_).at[:, -2:].set(True)

    # f32 compute path (validation): tight tolerance vs high-precision reference
    mha = SelfMultiheadAttentionPallas(embed_dim, num_heads,
                                       compute_dtype=jnp.float32, key=k_params)

    out = jax.block_until_ready(mha(query, key_padding_mask))
    ref = mha.reference(query, key_padding_mask)
    np.testing.assert_allclose(np.asarray(out), np.asarray(ref),
                               rtol=2e-3, atol=2e-3)

    out2 = jax.block_until_ready(mha(query))
    ref2 = mha.reference(query)
    np.testing.assert_allclose(np.asarray(out2), np.asarray(ref2),
                               rtol=2e-3, atol=2e-3)

    # default compute path: bf16 MXU operands, f32 accumulation (loose tolerance)
    mha_bf16 = SelfMultiheadAttentionPallas(embed_dim, num_heads, key=k_params)
    out3 = jax.block_until_ready(mha_bf16(query, key_padding_mask))
    np.testing.assert_allclose(np.asarray(out3), np.asarray(ref),
                               rtol=5e-2, atol=5e-2)

    print("KERNEL_OK")
</pallas_src>

<mosaic_0001>
module attributes {stable_mosaic.version = 11 : i64} {
  func.func @kernel(%arg0: i32, %arg1: i32, %arg2: memref<16x32xf32, #tpu.memory_space<vmem>>, %arg3: memref<32x96xf32, #tpu.memory_space<vmem>>, %arg4: memref<1x96xf32, #tpu.memory_space<vmem>>, %arg5: memref<16x96xf32, #tpu.memory_space<vmem>>) attributes {dimension_semantics = [#tpu.dimension_semantics<parallel>, #tpu.dimension_semantics<parallel>], iteration_bounds = array<i64: 1, 1>, scalar_prefetch = 0 : i64, scratch_operands = 0 : i64, tpu.core_type = #tpu.core_type<tc>, window_params = [{transform_indices = @transform_0, window_bounds = array<i64: 16, 32>}, {transform_indices = @transform_1, window_bounds = array<i64: 32, 96>}, {transform_indices = @transform_2, window_bounds = array<i64: 1, 96>}, {transform_indices = @transform_3, window_bounds = array<i64: 16, 96>}]} {
    %c0 = arith.constant 0 : index
    %c0_0 = arith.constant 0 : index
    %0 = vector.load %arg2[%c0, %c0_0] : memref<16x32xf32, #tpu.memory_space<vmem>>, vector<16x32xf32>
    %c0_1 = arith.constant 0 : index
    %c0_2 = arith.constant 0 : index
    %1 = vector.load %arg3[%c0_1, %c0_2] : memref<32x96xf32, #tpu.memory_space<vmem>>, vector<32x96xf32>
    %cst = arith.constant dense<0.000000e+00> : vector<16x96xf32>
    %2 = tpu.matmul %0, %1, %cst {dimension_numbers = #tpu.dot_dimension_numbers<[1], [0], [0], [1], [0, 0, 1, 1], [], []>, precision = #tpu.contract_precision<fp32>} : vector<16x32xf32>, vector<32x96xf32>, vector<16x96xf32> -> vector<16x96xf32>
    %c0_3 = arith.constant 0 : index
    %c0_4 = arith.constant 0 : index
    %3 = vector.load %arg4[%c0_3, %c0_4] : memref<1x96xf32, #tpu.memory_space<vmem>>, vector<1x96xf32>
    %4 = vector.broadcast %3 : vector<1x96xf32> to vector<16x96xf32>
    %5 = arith.addf %2, %4 : vector<16x96xf32>
    %c0_5 = arith.constant 0 : index
    %c0_6 = arith.constant 0 : index
    %6 = vector.load %arg5[%c0_5, %c0_6] : memref<16x96xf32, #tpu.memory_space<vmem>>, vector<16x96xf32>
    tpu.vector_store %arg5[%c0_5, %c0_6], %5 {strides = array<i32>} : memref<16x96xf32, #tpu.memory_space<vmem>>, vector<16x96xf32>,
    return
  }
  func.func @transform_0(%arg0: i32, %arg1: i32) -> (i32, i32) {
    %c0_i32 = arith.constant 0 : i32
    %c0_i32_0 = arith.constant 0 : i32
    return %arg0, %c0_i32 : i32, i32
  }
  func.func @transform_1(%arg0: i32, %arg1: i32) -> (i32, i32) {
    %c0_i32 = arith.constant 0 : i32
    %c0_i32_0 = arith.constant 0 : i32
    return %c0_i32, %arg1 : i32, i32
  }
  func.func @transform_2(%arg0: i32, %arg1: i32) -> (i32, i32) {
    %c0_i32 = arith.constant 0 : i32
    %c0_i32_0 = arith.constant 0 : i32
    return %c0_i32, %arg1 : i32, i32
  }
  func.func @transform_3(%arg0: i32, %arg1: i32) -> (i32, i32) {
    %c0_i32 = arith.constant 0 : i32
    return %arg0, %arg1 : i32, i32
  }
}

</mosaic_0001>

<llo_original>
// kernel: tpu_custom_call.1
$region0: #{tpu_custom_call.1}
  #allocation0 [shape = 'u32[]', space=smem, size = 0x4, offset = 0x4, fixed_abs, tag = 'smem constant byte address 0x4 - core index']
  #allocation1 [shape = 'u32[144,128]{1,0:T(1,128)}', space=vmem, size = 0x12000, scoped, tag = 'internal scratch']
  %s0 = inlined_call_operand.hbm [shape: f32[16,32], index: 0, kind: input, shape index: {}]
  %s1 = inlined_call_operand.hbm [shape: f32[32,96], index: 1, kind: input, shape index: {}]
  %s2 = inlined_call_operand.vmem [shape: f32[1,96], index: 2, kind: input, shape index: {}]
  %s3 = inlined_call_operand.hbm [shape: f32[16,96], index: 3, kind: output, shape index: {}]
  %s4 = sld [smem:[#allocation0]]
  $region30: #{tpu_custom_call.1} parent=0
    _
  %s6 = ssub.s32 1, %s4
  %s7 = scalar_select 0, %s6, %s4
  $region1: #{tpu_custom_call.1} parent=0
    #allocation2 [shape = 'u8[8192]{0}', space=vmem, size = 0x2000, scoped, tag = 'input window, operand 0, single buffered']
    #allocation3 [shape = 's32[1]{0}', space=sflag, size = 0x4, scoped, tag = 'scoped memory for tpu_custom_call.1']
    #allocation4 [shape = 's32[1]{0}', space=sflag, size = 0x4, scoped, tag = 'scoped memory for tpu_custom_call.1']
    #allocation5 [shape = 'u8[16384]{0}', space=vmem, size = 0x4000, scoped, tag = 'input window, operand 1, single buffered']
    #allocation6 [shape = 's32[1]{0}', space=sflag, size = 0x4, scoped, tag = 'scoped memory for tpu_custom_call.1']
    #allocation7 [shape = 'u8[8192]{0}', space=vmem, size = 0x2000, scoped, tag = 'output window, operand 0, single buffered']
    %8 = vsyncpa [#allocation3], 0
    %9 = vsyncpa [#allocation6], 0
    %10 = vsyncpa [#allocation4], 0
    // Predicated region
    $region2: #{tpu_custom_call.1} parent=1 // pred_check
      _
    $region3: #{tpu_custom_call.1} parent=1 // pred_check_branch
      %12 = sbr.rel (0) target = $region5
    $region4: #{tpu_custom_call.1} parent=1 // pred_region
      %s14 = ssub.s32 256, 256
      %15 = vsyncadd [#allocation3], %s14
      %s16 = sshll.u32 [#allocation2], 4
      %s17 = int_to_ptr.vmem [resolvable:$true] %s16
      %22 = dma.hbm_to_vmem [thread:$0]  %s0, 256, %s17, [#allocation3], 128, 128, 8
    $region5: #{tpu_custom_call.1} parent=1 // pred_fallthru
      _
    // Predicated region
    $region6: #{tpu_custom_call.1} parent=1 // pred_check
      _
    $region7: #{tpu_custom_call.1} parent=1 // pred_check_branch
      %24 = sbr.rel (0) target = $region9
    $region8: #{tpu_custom_call.1} parent=1 // pred_region
      %s26 = ssub.s32 512, 512
      %27 = vsyncadd [#allocation6], %s26
      %s28 = sshll.u32 [#allocation5], 4
      %s29 = int_to_ptr.vmem [resolvable:$true] %s28
      %34 = dma.hbm_to_vmem [thread:$0]  %s1, 512, %s29, [#allocation6], 128, 128, 8
    $region9: #{tpu_custom_call.1} parent=1 // pred_fallthru
      _
    // Predicated region
    $region10: #{tpu_custom_call.1} parent=1 // pred_check
      _
    $region11: #{tpu_custom_call.1} parent=1 // pred_check_branch
      %36 = sbr.rel (0) target = $region13
    $region12: #{tpu_custom_call.1} parent=1 // pred_region
      _
    $region13: #{tpu_custom_call.1} parent=1 // pred_fallthru
      _
    // Predicated region
    $region14: #{tpu_custom_call.1} parent=1 // pred_check
      _
    $region15: #{tpu_custom_call.1} parent=1 // pred_check_branch
      %38 = sbr.rel (0) target = $region17
    $region16: #{tpu_custom_call.1} parent=1 // pred_region
      %39 = dma.done [#allocation3], 256
    $region17: #{tpu_custom_call.1} parent=1 // pred_fallthru
      _
    // Predicated region
    $region18: #{tpu_custom_call.1} parent=1 // pred_check
      _
    $region19: #{tpu_custom_call.1} parent=1 // pred_check_branch
      %41 = sbr.rel (0) target = $region21
    $region20: #{tpu_custom_call.1} parent=1 // pred_region
      %42 = dma.done [#allocation6], 512
    $region21: #{tpu_custom_call.1} parent=1 // pred_fallthru
      _
    %v43 = vld [vmem:[#allocation2] sm:$0xff]
    %v44 = vld [vmem:[#allocation2 + $0x8] sm:$0xff]
    %v45 = vld [vmem:[#allocation5] sm:$0xff]
    %v46 = vld [vmem:[#allocation5 + $0x8] sm:$0xff]
    %v47 = vld [vmem:[#allocation5 + $0x10] sm:$0xff]
    %v48 = vld [vmem:[#allocation5 + $0x18] sm:$0xff]
    %v49 = vld [vmem:[%s2] sm:$0x1]
    %v51 = vlaneseq
    %v52 = vshrl.u32 %v51, 7
    %v53 = vsub.s32 0, %v52
    %v54 = vrot.slane %v49, %v53
    %vm56 = vcmask 261120
    %v58 = vsel %vm56, %v43, 0
    %v61 = vsel %vm56, %v44, 0
    %63 = vmatprep.subr.mxu0 0.0
    %64 = vmatpush1.msra.mxu0 0.0
    %65 = vmatprep.subr.mxu0 0.0
    %66 = vmatpush1.msra.mxu0 0.0
    %67 = vmatprep.subr.mxu0 0.0
    %68 = vmatpush1.msra.mxu0 0.0
    %69 = vmatprep.subr.mxu0 0.0
    %70 = vmatpush1.msra.mxu0 0.0
    %71 = vmatprep.subr.mxu0 0.0
    %72 = vmatpush1.msra.mxu0 0.0
    %73 = vmatprep.subr.mxu0 0.0
    %74 = vmatpush1.msra.mxu0 0.0
    %75 = vmatprep.subr.mxu0 0.0
    %76 = vmatpush1.msra.mxu0 0.0
    %77 = vmatprep.subr.mxu0 0.0
    %78 = vmatpush1.msra.mxu0 0.0
    %79 = vmatprep.subr.mxu0 0.0
    %80 = vmatpush1.msra.mxu0 0.0
    %81 = vmatprep.subr.mxu0 0.0
    %82 = vmatpush1.msra.mxu0 0.0
    %83 = vmatprep.subr.mxu0 0.0
    %84 = vmatpush1.msra.mxu0 0.0
    %85 = vmatprep.subr.mxu0 0.0
    %86 = vmatpush1.msra.mxu0 0.0
    %87 = vmatprep.subr.mxu0 0.0
    %v88 = vand.u32 %v48, 4294901760
    %89 = vmatpush1.msra.mxu0 %v88
    %90 = vmatprep.subr.mxu0 0.0
    %v91 = vand.u32 %v47, 4294901760
    %92 = vmatpush1.msra.mxu0 %v91
    %93 = vmatprep.subr.mxu0 0.0
    %v94 = vand.u32 %v46, 4294901760
    %95 = vmatpush1.msra.mxu0 %v94
    %96 = vmatprep.subr.mxu0 0.0
    %v97 = vand.u32 %v45, 4294901760
    %98 = vmatpush1.msra.mxu0 %v97
    %99 = vmatprep.subr.mxu0 0.0
    %100 = vmatpush2.msra.mxu0 0.0
    %101 = vmatprep.subr.mxu0 0.0
    %102 = vmatpush2.msra.mxu0 0.0
    %103 = vmatprep.subr.mxu0 0.0
    %104 = vmatpush2.msra.mxu0 0.0
    %105 = vmatprep.subr.mxu0 0.0
    %106 = vmatpush2.msra.mxu0 0.0
    %107 = vmatprep.subr.mxu0 0.0
    %108 = vmatpush2.msra.mxu0 0.0
    %109 = vmatprep.subr.mxu0 0.0
    %110 = vmatpush2.msra.mxu0 0.0
    %111 = vmatprep.subr.mxu0 0.0
    %112 = vmatpush2.msra.mxu0 0.0
    %113 = vmatprep.subr.mxu0 0.0
    %114 = vmatpush2.msra.mxu0 0.0
    %115 = vmatprep.subr.mxu0 0.0
    %116 = vmatpush2.msra.mxu0 0.0
    %117 = vmatprep.subr.mxu0 0.0
    %118 = vmatpush2.msra.mxu0 0.0
    %119 = vmatprep.subr.mxu0 0.0
    %120 = vmatpush2.msra.mxu0 0.0
    %121 = vmatprep.subr.mxu0 0.0
    %122 = vmatpush2.msra.mxu0 0.0
    %123 = vmatprep.subr.mxu0 0.0
    %124 = vmatpush2.msra.mxu0 0.0
    %125 = vmatprep.subr.mxu0 0.0
    %126 = vmatpush2.msra.mxu0 0.0
    %127 = vmatprep.subr.mxu0 0.0
    %128 = vmatpush2.msra.mxu0 0.0
    %129 = vmatprep.subr.mxu0 0.0
    %130 = vmatpush2.msra.mxu0 0.0
    %131 = vmatprep.mubr.f32.mxu0 0.0
    %v132 = vand.u32 %v58, 4294901760
    %v133 = vsub.f32 %v58, %v132
    %v134 = vand.u32 %v133, 4294901760
    %v135 = vsub.f32 %v133, %v134
    %v136 = vand.u32 %v135, 4294901760
    %137 = vmatmul.mubr.f32.gmra.mxu0 %v136
    %v138 = vpop.f32.mrf.mxu0
    %v139 = vadd.f32 %v54, %v138
    %v140 = vpop.f32.mrf.mxu0
    %141 = vmatprep.mubr.f32.mxu0 0.0
    %v142 = vand.u32 %v61, 4294901760
    %v143 = vsub.f32 %v61, %v142
    %v144 = vand.u32 %v143, 4294901760
    %v145 = vsub.f32 %v143, %v144
    %v146 = vand.u32 %v145, 4294901760
    %147 = vmatmul.mubr.f32.gmra.mxu0 %v146
    %v148 = vpop.f32.mrf.mxu0
    %v149 = vadd.f32 %v54, %v148
    %v150 = vpop.f32.mrf.mxu0
    %151 = vdwg.mxu0
    %152 = vmatprep.subr.mxu0 0.0
    %153 = vmatpush1.msra.mxu0 0.0
    %154 = vmatprep.subr.mxu0 0.0
    %155 = vmatpush1.msra.mxu0 0.0
    %156 = vmatprep.subr.mxu0 0.0
    %157 = vmatpush1.msra.mxu0 0.0
    %158 = vmatprep.subr.mxu0 0.0
    %159 = vmatpush1.msra.mxu0 0.0
    %160 = vmatprep.subr.mxu0 0.0
    %161 = vmatpush1.msra.mxu0 0.0
    %162 = vmatprep.subr.mxu0 0.0
    %163 = vmatpush1.msra.mxu0 0.0
    %164 = vmatprep.subr.mxu0 0.0
    %165 = vmatpush1.msra.mxu0 0.0
    %166 = vmatprep.subr.mxu0 0.0
    %167 = vmatpush1.msra.mxu0 0.0
    %168 = vmatprep.subr.mxu0 0.0
    %169 = vmatpush1.msra.mxu0 0.0
    %170 = vmatprep.subr.mxu0 0.0
    %171 = vmatpush1.msra.mxu0 0.0
    %172 = vmatprep.subr.mxu0 0.0
    %173 = vmatpush1.msra.mxu0 0.0
    %174 = vmatprep.subr.mxu0 0.0
    %175 = vmatpush1.msra.mxu0 0.0
    %176 = vmatprep.subr.mxu0 0.0
    %v177 = vand.u32 %v48, 4294901760
    %v178 = vsub.f32 %v48, %v177
    %v179 = vand.u32 %v178, 4294901760
    %v180 = vsub.f32 %v178, %v179
    %v181 = vand.u32 %v180, 4294901760
    %182 = vmatpush1.msra.mxu0 %v181
    %183 = vmatprep.subr.mxu0 0.0
    %v184 = vand.u32 %v47, 4294901760
    %v185 = vsub.f32 %v47, %v184
    %v186 = vand.u32 %v185, 4294901760
    %v187 = vsub.f32 %v185, %v186
    %v188 = vand.u32 %v187, 4294901760
    %189 = vmatpush1.msra.mxu0 %v188
    %190 = vmatprep.subr.mxu0 0.0
    %v191 = vand.u32 %v46, 4294901760
    %v192 = vsub.f32 %v46, %v191
    %v193 = vand.u32 %v192, 4294901760
    %v194 = vsub.f32 %v192, %v193
    %v195 = vand.u32 %v194, 4294901760
    %196 = vmatpush1.msra.mxu0 %v195
    %197 = vmatprep.subr.mxu0 0.0
    %v198 = vand.u32 %v45, 4294901760
    %v199 = vsub.f32 %v45, %v198
    %v200 = vand.u32 %v199, 4294901760
    %v201 = vsub.f32 %v199, %v200
    %v202 = vand.u32 %v201, 4294901760
    %203 = vmatpush1.msra.mxu0 %v202
    %204 = vmatprep.subr.mxu0 0.0
    %205 = vmatpush2.msra.mxu0 0.0
    %206 = vmatprep.subr.mxu0 0.0
    %207 = vmatpush2.msra.mxu0 0.0
    %208 = vmatprep.subr.mxu0 0.0
    %209 = vmatpush2.msra.mxu0 0.0
    %210 = vmatprep.subr.mxu0 0.0
    %211 = vmatpush2.msra.mxu0 0.0
    %212 = vmatprep.subr.mxu0 0.0
    %213 = vmatpush2.msra.mxu0 0.0
    %214 = vmatprep.subr.mxu0 0.0
    %215 = vmatpush2.msra.mxu0 0.0
    %216 = vmatprep.subr.mxu0 0.0
    %217 = vmatpush2.msra.mxu0 0.0
    %218 = vmatprep.subr.mxu0 0.0
    %219 = vmatpush2.msra.mxu0 0.0
    %220 = vmatprep.subr.mxu0 0.0
    %221 = vmatpush2.msra.mxu0 0.0
    %222 = vmatprep.subr.mxu0 0.0
    %223 = vmatpush2.msra.mxu0 0.0
    %224 = vmatprep.subr.mxu0 0.0
    %225 = vmatpush2.msra.mxu0 0.0
    %226 = vmatprep.subr.mxu0 0.0
    %227 = vmatpush2.msra.mxu0 0.0
    %228 = vmatprep.subr.mxu0 0.0
    %229 = vmatpush2.msra.mxu0 0.0
    %230 = vmatprep.subr.mxu0 0.0
    %231 = vmatpush2.msra.mxu0 0.0
    %232 = vmatprep.subr.mxu0 0.0
    %233 = vmatpush2.msra.mxu0 0.0
    %234 = vmatprep.subr.mxu0 0.0
    %235 = vmatpush2.msra.mxu0 0.0
    %236 = vmatprep.mubr.f32.mxu0 0.0
    %v237 = vand.u32 %v58, 4294901760
    %238 = vmatmul.mubr.f32.gmra.mxu0 %v237
    %v239 = vpop.f32.mrf.mxu0
    %v240 = vadd.f32 %v139, %v239
    %v241 = vpop.f32.mrf.mxu0
    %242 = vmatprep.mubr.f32.mxu0 0.0
    %v243 = vand.u32 %v61, 4294901760
    %244 = vmatmul.mubr.f32.gmra.mxu0 %v243
    %v245 = vpop.f32.mrf.mxu0
    %v246 = vadd.f32 %v149, %v245
    %v247 = vpop.f32.mrf.mxu0
    %248 = vdwg.mxu0
    %249 = vmatprep.subr.mxu0 0.0
    %250 = vmatpush1.msra.mxu0 0.0
    %251 = vmatprep.subr.mxu0 0.0
    %252 = vmatpush1.msra.mxu0 0.0
    %253 = vmatprep.subr.mxu0 0.0
    %254 = vmatpush1.msra.mxu0 0.0
    %255 = vmatprep.subr.mxu0 0.0
    %256 = vmatpush1.msra.mxu0 0.0
    %257 = vmatprep.subr.mxu0 0.0
    %258 = vmatpush1.msra.mxu0 0.0
    %259 = vmatprep.subr.mxu0 0.0
    %260 = vmatpush1.msra.mxu0 0.0
    %261 = vmatprep.subr.mxu0 0.0
    %262 = vmatpush1.msra.mxu0 0.0
    %263 = vmatprep.subr.mxu0 0.0
    %264 = vmatpush1.msra.mxu0 0.0
    %265 = vmatprep.subr.mxu0 0.0
    %266 = vmatpush1.msra.mxu0 0.0
    %267 = vmatprep.subr.mxu0 0.0
    %268 = vmatpush1.msra.mxu0 0.0
    %269 = vmatprep.subr.mxu0 0.0
    %270 = vmatpush1.msra.mxu0 0.0
    %271 = vmatprep.subr.mxu0 0.0
    %272 = vmatpush1.msra.mxu0 0.0
    %273 = vmatprep.subr.mxu0 0.0
    %v274 = vand.u32 %v48, 4294901760
    %v275 = vsub.f32 %v48, %v274
    %276 = vmatpush1.msra.mxu0 %v275
    %277 = vmatprep.subr.mxu0 0.0
    %v278 = vand.u32 %v47, 4294901760
    %v279 = vsub.f32 %v47, %v278
    %280 = vmatpush1.msra.mxu0 %v279
    %281 = vmatprep.subr.mxu0 0.0
    %v282 = vand.u32 %v46, 4294901760
    %v283 = vsub.f32 %v46, %v282
    %284 = vmatpush1.msra.mxu0 %v283
    %285 = vmatprep.subr.mxu0 0.0
    %v286 = vand.u32 %v45, 4294901760
    %v287 = vsub.f32 %v45, %v286
    %288 = vmatpush1.msra.mxu0 %v287
    %289 = vmatprep.subr.mxu0 0.0
    %290 = vmatpush2.msra.mxu0 0.0
    %291 = vmatprep.subr.mxu0 0.0
    %292 = vmatpush2.msra.mxu0 0.0
    %293 = vmatprep.subr.mxu0 0.0
    %294 = vmatpush2.msra.mxu0 0.0
    %295 = vmatprep.subr.mxu0 0.0
    %296 = vmatpush2.msra.mxu0 0.0
    %297 = vmatprep.subr.mxu0 0.0
    %298 = vmatpush2.msra.mxu0 0.0
    %299 = vmatprep.subr.mxu0 0.0
    %300 = vmatpush2.msra.mxu0 0.0
    %301 = vmatprep.subr.mxu0 0.0
    %302 = vmatpush2.msra.mxu0 0.0
    %303 = vmatprep.subr.mxu0 0.0
    %304 = vmatpush2.msra.mxu0 0.0
    %305 = vmatprep.subr.mxu0 0.0
    %306 = vmatpush2.msra.mxu0 0.0
    %307 = vmatprep.subr.mxu0 0.0
    %308 = vmatpush2.msra.mxu0 0.0
    %309 = vmatprep.subr.mxu0 0.0
    %310 = vmatpush2.msra.mxu0 0.0
    %311 = vmatprep.subr.mxu0 0.0
    %312 = vmatpush2.msra.mxu0 0.0
    %313 = vmatprep.subr.mxu0 0.0
    %314 = vmatpush2.msra.mxu0 0.0
    %315 = vmatprep.subr.mxu0 0.0
    %316 = vmatpush2.msra.mxu0 0.0
    %317 = vmatprep.subr.mxu0 0.0
    %318 = vmatpush2.msra.mxu0 0.0
    %319 = vmatprep.subr.mxu0 0.0
    %320 = vmatpush2.msra.mxu0 0.0
    %321 = vmatprep.mubr.f32.mxu0 0.0
    %v322 = vand.u32 %v58, 4294901760
    %v323 = vsub.f32 %v58, %v322
    %324 = vmatmul.mubr.f32.gmra.mxu0 %v323
    %v325 = vpop.f32.mrf.mxu0
    %v326 = vadd.f32 %v240, %v325
    %v327 = vpop.f32.mrf.mxu0
    %328 = vmatprep.mubr.f32.mxu0 0.0
    %v329 = vand.u32 %v61, 4294901760
    %v330 = vsub.f32 %v61, %v329
    %331 = vmatmul.mubr.f32.gmra.mxu0 %v330
    %v332 = vpop.f32.mrf.mxu0
    %v333 = vadd.f32 %v246, %v332
    %v334 = vpop.f32.mrf.mxu0
    %335 = vdwg.mxu0
    %336 = vmatprep.subr.mxu0 0.0
    %337 = vmatpush1.msra.mxu0 0.0
    %338 = vmatprep.subr.mxu0 0.0
    %339 = vmatpush1.msra.mxu0 0.0
    %340 = vmatprep.subr.mxu0 0.0
    %341 = vmatpush1.msra.mxu0 0.0
    %342 = vmatprep.subr.mxu0 0.0
    %343 = vmatpush1.msra.mxu0 0.0
    %344 = vmatprep.subr.mxu0 0.0
    %345 = vmatpush1.msra.mxu0 0.0
    %346 = vmatprep.subr.mxu0 0.0
    %347 = vmatpush1.msra.mxu0 0.0
    %348 = vmatprep.subr.mxu0 0.0
    %349 = vmatpush1.msra.mxu0 0.0
    %350 = vmatprep.subr.mxu0 0.0
    %351 = vmatpush1.msra.mxu0 0.0
    %352 = vmatprep.subr.mxu0 0.0
    %353 = vmatpush1.msra.mxu0 0.0
    %354 = vmatprep.subr.mxu0 0.0
    %355 = vmatpush1.msra.mxu0 0.0
    %356 = vmatprep.subr.mxu0 0.0
    %357 = vmatpush1.msra.mxu0 0.0
    %358 = vmatprep.subr.mxu0 0.0
    %359 = vmatpush1.msra.mxu0 0.0
    %360 = vmatprep.subr.mxu0 0.0
    %v361 = vand.u32 %v48, 4294901760
    %362 = vmatpush1.msra.mxu0 %v361
    %363 = vmatprep.subr.mxu0 0.0
    %v364 = vand.u32 %v47, 4294901760
    %365 = vmatpush1.msra.mxu0 %v364
    %366 = vmatprep.subr.mxu0 0.0
    %v367 = vand.u32 %v46, 4294901760
    %368 = vmatpush1.msra.mxu0 %v367
    %369 = vmatprep.subr.mxu0 0.0
    %v370 = vand.u32 %v45, 4294901760
    %371 = vmatpush1.msra.mxu0 %v370
    %372 = vmatprep.subr.mxu0 0.0
    %373 = vmatpush2.msra.mxu0 0.0
    %374 = vmatprep.subr.mxu0 0.0
    %375 = vmatpush2.msra.mxu0 0.0
    %376 = vmatprep.subr.mxu0 0.0
    %377 = vmatpush2.msra.mxu0 0.0
    %378 = vmatprep.subr.mxu0 0.0
    %379 = vmatpush2.msra.mxu0 0.0
    %380 = vmatprep.subr.mxu0 0.0
    %381 = vmatpush2.msra.mxu0 0.0
    %382 = vmatprep.subr.mxu0 0.0
    %383 = vmatpush2.msra.mxu0 0.0
    %384 = vmatprep.subr.mxu0 0.0
    %385 = vmatpush2.msra.mxu0 0.0
    %386 = vmatprep.subr.mxu0 0.0
    %387 = vmatpush2.msra.mxu0 0.0
    %388 = vmatprep.subr.mxu0 0.0
    %389 = vmatpush2.msra.mxu0 0.0
    %390 = vmatprep.subr.mxu0 0.0
    %391 = vmatpush2.msra.mxu0 0.0
    %392 = vmatprep.subr.mxu0 0.0
    %393 = vmatpush2.msra.mxu0 0.0
    %394 = vmatprep.subr.mxu0 0.0
    %395 = vmatpush2.msra.mxu0 0.0
    %396 = vmatprep.subr.mxu0 0.0
    %397 = vmatpush2.msra.mxu0 0.0
    %398 = vmatprep.subr.mxu0 0.0
    %399 = vmatpush2.msra.mxu0 0.0
    %400 = vmatprep.subr.mxu0 0.0
    %401 = vmatpush2.msra.mxu0 0.0
    %402 = vmatprep.subr.mxu0 0.0
    %403 = vmatpush2.msra.mxu0 0.0
    %404 = vmatprep.mubr.f32.mxu0 0.0
    %v405 = vand.u32 %v58, 4294901760
    %v406 = vsub.f32 %v58, %v405
    %v407 = vand.u32 %v406, 4294901760
    %408 = vmatmul.mubr.f32.gmra.mxu0 %v407
    %v409 = vpop.f32.mrf.mxu0
    %v410 = vadd.f32 %v326, %v409
    %v411 = vpop.f32.mrf.mxu0
    %412 = vmatprep.mubr.f32.mxu0 0.0
    %v413 = vand.u32 %v61, 4294901760
    %v414 = vsub.f32 %v61, %v413
    %v415 = vand.u32 %v414, 4294901760
    %416 = vmatmul.mubr.f32.gmra.mxu0 %v415
    %v417 = vpop.f32.mrf.mxu0
    %v418 = vadd.f32 %v333, %v417
    %v419 = vpop.f32.mrf.mxu0
    %420 = vdwg.mxu0
    %421 = vmatprep.subr.mxu0 0.0
    %422 = vmatpush1.msra.mxu0 0.0
    %423 = vmatprep.subr.mxu0 0.0
    %424 = vmatpush1.msra.mxu0 0.0
    %425 = vmatprep.subr.mxu0 0.0
    %426 = vmatpush1.msra.mxu0 0.0
    %427 = vmatprep.subr.mxu0 0.0
    %428 = vmatpush1.msra.mxu0 0.0
    %429 = vmatprep.subr.mxu0 0.0
    %430 = vmatpush1.msra.mxu0 0.0
    %431 = vmatprep.subr.mxu0 0.0
    %432 = vmatpush1.msra.mxu0 0.0
    %433 = vmatprep.subr.mxu0 0.0
    %434 = vmatpush1.msra.mxu0 0.0
    %435 = vmatprep.subr.mxu0 0.0
    %436 = vmatpush1.msra.mxu0 0.0
    %437 = vmatprep.subr.mxu0 0.0
    %438 = vmatpush1.msra.mxu0 0.0
    %439 = vmatprep.subr.mxu0 0.0
    %440 = vmatpush1.msra.mxu0 0.0
    %441 = vmatprep.subr.mxu0 0.0
    %442 = vmatpush1.msra.mxu0 0.0
    %443 = vmatprep.subr.mxu0 0.0
    %444 = vmatpush1.msra.mxu0 0.0
    %445 = vmatprep.subr.mxu0 0.0
    %v446 = vand.u32 %v48, 4294901760
    %v447 = vsub.f32 %v48, %v446
    %v448 = vand.u32 %v447, 4294901760
    %449 = vmatpush1.msra.mxu0 %v448
    %450 = vmatprep.subr.mxu0 0.0
    %v451 = vand.u32 %v47, 4294901760
    %v452 = vsub.f32 %v47, %v451
    %v453 = vand.u32 %v452, 4294901760
    %454 = vmatpush1.msra.mxu0 %v453
    %455 = vmatprep.subr.mxu0 0.0
    %v456 = vand.u32 %v46, 4294901760
    %v457 = vsub.f32 %v46, %v456
    %v458 = vand.u32 %v457, 4294901760
    %459 = vmatpush1.msra.mxu0 %v458
    %460 = vmatprep.subr.mxu0 0.0
    %v461 = vand.u32 %v45, 4294901760
    %v462 = vsub.f32 %v45, %v461
    %v463 = vand.u32 %v462, 4294901760
    %464 = vmatpush1.msra.mxu0 %v463
    %465 = vmatprep.subr.mxu0 0.0
    %466 = vmatpush2.msra.mxu0 0.0
    %467 = vmatprep.subr.mxu0 0.0
    %468 = vmatpush2.msra.mxu0 0.0
    %469 = vmatprep.subr.mxu0 0.0
    %470 = vmatpush2.msra.mxu0 0.0
    %471 = vmatprep.subr.mxu0 0.0
    %472 = vmatpush2.msra.mxu0 0.0
    %473 = vmatprep.subr.mxu0 0.0
    %474 = vmatpush2.msra.mxu0 0.0
    %475 = vmatprep.subr.mxu0 0.0
    %476 = vmatpush2.msra.mxu0 0.0
    %477 = vmatprep.subr.mxu0 0.0
    %478 = vmatpush2.msra.mxu0 0.0
    %479 = vmatprep.subr.mxu0 0.0
    %480 = vmatpush2.msra.mxu0 0.0
    %481 = vmatprep.subr.mxu0 0.0
    %482 = vmatpush2.msra.mxu0 0.0
    %483 = vmatprep.subr.mxu0 0.0
    %484 = vmatpush2.msra.mxu0 0.0
    %485 = vmatprep.subr.mxu0 0.0
    %486 = vmatpush2.msra.mxu0 0.0
    %487 = vmatprep.subr.mxu0 0.0
    %488 = vmatpush2.msra.mxu0 0.0
    %489 = vmatprep.subr.mxu0 0.0
    %490 = vmatpush2.msra.mxu0 0.0
    %491 = vmatprep.subr.mxu0 0.0
    %492 = vmatpush2.msra.mxu0 0.0
    %493 = vmatprep.subr.mxu0 0.0
    %494 = vmatpush2.msra.mxu0 0.0
    %495 = vmatprep.subr.mxu0 0.0
    %496 = vmatpush2.msra.mxu0 0.0
    %497 = vmatprep.mubr.f32.mxu0 0.0
    %v498 = vand.u32 %v58, 4294901760
    %499 = vmatmul.mubr.f32.gmra.mxu0 %v498
    %v500 = vpop.f32.mrf.mxu0
    %v501 = vadd.f32 %v410, %v500
    %v502 = vpop.f32.mrf.mxu0
    %503 = vmatprep.mubr.f32.mxu0 0.0
    %v504 = vand.u32 %v61, 4294901760
    %505 = vmatmul.mubr.f32.gmra.mxu0 %v504
    %v506 = vpop.f32.mrf.mxu0
    %v507 = vadd.f32 %v418, %v506
    %v508 = vpop.f32.mrf.mxu0
    %509 = vdwg.mxu0
    %510 = vmatprep.subr.mxu0 0.0
    %511 = vmatpush1.msra.mxu0 0.0
    %512 = vmatprep.subr.mxu0 0.0
    %513 = vmatpush1.msra.mxu0 0.0
    %514 = vmatprep.subr.mxu0 0.0
    %515 = vmatpush1.msra.mxu0 0.0
    %516 = vmatprep.subr.mxu0 0.0
    %517 = vmatpush1.msra.mxu0 0.0
    %518 = vmatprep.subr.mxu0 0.0
    %519 = vmatpush1.msra.mxu0 0.0
    %520 = vmatprep.subr.mxu0 0.0
    %521 = vmatpush1.msra.mxu0 0.0
    %522 = vmatprep.subr.mxu0 0.0
    %523 = vmatpush1.msra.mxu0 0.0
    %524 = vmatprep.subr.mxu0 0.0
    %525 = vmatpush1.msra.mxu0 0.0
    %526 = vmatprep.subr.mxu0 0.0
    %527 = vmatpush1.msra.mxu0 0.0
    %528 = vmatprep.subr.mxu0 0.0
    %529 = vmatpush1.msra.mxu0 0.0
    %530 = vmatprep.subr.mxu0 0.0
    %531 = vmatpush1.msra.mxu0 0.0
    %532 = vmatprep.subr.mxu0 0.0
    %533 = vmatpush1.msra.mxu0 0.0
    %534 = vmatprep.subr.mxu0 0.0
    %v535 = vand.u32 %v48, 4294901760
    %536 = vmatpush1.msra.mxu0 %v535
    %537 = vmatprep.subr.mxu0 0.0
    %v538 = vand.u32 %v47, 4294901760
    %539 = vmatpush1.msra.mxu0 %v538
    %540 = vmatprep.subr.mxu0 0.0
    %v541 = vand.u32 %v46, 4294901760
    %542 = vmatpush1.msra.mxu0 %v541
    %543 = vmatprep.subr.mxu0 0.0
    %v544 = vand.u32 %v45, 4294901760
    %545 = vmatpush1.msra.mxu0 %v544
    %546 = vmatprep.subr.mxu0 0.0
    %547 = vmatpush2.msra.mxu0 0.0
    %548 = vmatprep.subr.mxu0 0.0
    %549 = vmatpush2.msra.mxu0 0.0
    %550 = vmatprep.subr.mxu0 0.0
    %551 = vmatpush2.msra.mxu0 0.0
    %552 = vmatprep.subr.mxu0 0.0
    %553 = vmatpush2.msra.mxu0 0.0
    %554 = vmatprep.subr.mxu0 0.0
    %555 = vmatpush2.msra.mxu0 0.0
    %556 = vmatprep.subr.mxu0 0.0
    %557 = vmatpush2.msra.mxu0 0.0
    %558 = vmatprep.subr.mxu0 0.0
    %559 = vmatpush2.msra.mxu0 0.0
    %560 = vmatprep.subr.mxu0 0.0
    %561 = vmatpush2.msra.mxu0 0.0
    %562 = vmatprep.subr.mxu0 0.0
    %563 = vmatpush2.msra.mxu0 0.0
    %564 = vmatprep.subr.mxu0 0.0
    %565 = vmatpush2.msra.mxu0 0.0
    %566 = vmatprep.subr.mxu0 0.0
    %567 = vmatpush2.msra.mxu0 0.0
    %568 = vmatprep.subr.mxu0 0.0
    %569 = vmatpush2.msra.mxu0 0.0
    %570 = vmatprep.subr.mxu0 0.0
    %571 = vmatpush2.msra.mxu0 0.0
    %572 = vmatprep.subr.mxu0 0.0
    %573 = vmatpush2.msra.mxu0 0.0
    %574 = vmatprep.subr.mxu0 0.0
    %575 = vmatpush2.msra.mxu0 0.0
    %576 = vmatprep.subr.mxu0 0.0
    %577 = vmatpush2.msra.mxu0 0.0
    %578 = vmatprep.mubr.f32.mxu0 0.0
    %v579 = vand.u32 %v58, 4294901760
    %580 = vmatmul.mubr.f32.gmra.mxu0 %v579
    %v581 = vpop.f32.mrf.mxu0
    %v582 = vadd.f32 %v501, %v581
    %v583 = vpop.f32.mrf.mxu0
    %584 = vmatprep.mubr.f32.mxu0 0.0
    %v585 = vand.u32 %v61, 4294901760
    %586 = vmatmul.mubr.f32.gmra.mxu0 %v585
    %v587 = vpop.f32.mrf.mxu0
    %v588 = vadd.f32 %v507, %v587
    %v589 = vpop.f32.mrf.mxu0
    %590 = vdwg.mxu0
    %vm591 = vcmask 785408
    %592 = vst.msk [vmem:[#allocation7] sm:$0xff] %vm591, %v582
    %593 = vst.msk [vmem:[#allocation7 + $0x8] sm:$0xff] %vm591, %v588
    // Predicated region
    $region22: #{tpu_custom_call.1} parent=1 // pred_check
      _
    $region23: #{tpu_custom_call.1} parent=1 // pred_check_branch
      %595 = sbr.rel (0) target = $region25
    $region24: #{tpu_custom_call.1} parent=1 // pred_region
      %s597 = ssub.s32 256, 256
      %598 = vsyncadd [#allocation4], %s597
      %s599 = sshll.u32 [#allocation7], 4
      %s600 = int_to_ptr.vmem [resolvable:$true] %s599
      %605 = dma.vmem_to_hbm [thread:$0]  %s600, 256, %s3, [#allocation4], 128, 128, 8
    $region25: #{tpu_custom_call.1} parent=1 // pred_fallthru
      _
    // Predicated region
    $region26: #{tpu_custom_call.1} parent=1 // pred_check
      _
    $region27: #{tpu_custom_call.1} parent=1 // pred_check_branch
      %607 = sbr.rel (0) target = $region29
    $region28: #{tpu_custom_call.1} parent=1 // pred_region
      %608 = dma.done [#allocation4], 256
    $region29: #{tpu_custom_call.1} parent=1 // pred_fallthru
      _
    %609 = vsyncpa [#allocation3], 1
    %610 = vsyncpa [#allocation6], 1
    %611 = vsyncpa [#allocation4], 1

</llo_original>
